<compile_context>
chip_gen: v7x
topology: tpu7x:2x2x1
jax: 0.10.0
libtpu: 0.0.40
codegen_flags: <defaults>
</compile_context>

<pallas_src>
import jax
import jax.numpy as jnp
from jax.experimental import pallas as pl
from jax.experimental.pallas import tpu as pltpu

LANE = 128
TARGET_BLOCK_BYTES = 8 << 20   # ~8 MiB of input per grid step
VMEM_LIMIT_BYTES = 48 << 20    # 2 bufs x (in + out) x 8 MiB + headroom; < v7x 64 MiB


def _make_kernel(a: float, b: float, o: float):
    ab = a * b  # fold alpha*beta so the body is a*x - ab (one fewer vsub)

    def kernel(x_ref, o_ref):
        x = x_ref[...].astype(jnp.float32)       # f32 compute (v5e: no bf16 VPU/EUP)
        out = o * jax.nn.sigmoid(a * x - ab)     # VPU mul/sub + EUP logistic + VPU mul
        o_ref[...] = out.astype(o_ref.dtype)

    return kernel


def _tile_rows(rows: int, itemsize: int) -> int:
    """Sublane-aligned tile height targeting ~TARGET_BLOCK_BYTES per input block."""
    tile_r = max(8, (TARGET_BLOCK_BYTES // (LANE * itemsize)) // 8 * 8)
    rows_padded = -(-rows // 8) * 8
    return min(tile_r, rows_padded)


def generalized_logistic(x, alpha, beta, omega):
    """Elementwise omega * sigmoid(alpha * (x - beta)); same shape/dtype as x."""
    orig_shape = x.shape
    dtype = x.dtype
    a, b, o = float(alpha), float(beta), float(omega)

    n_total = int(x.size)
    if n_total == 0:
        return x

    itemsize = jnp.dtype(dtype).itemsize
    x_flat = x.reshape(-1)
    main = (n_total // LANE) * LANE
    tail = n_total - main

    def run_bulk(x1d):
        rows = x1d.shape[0] // LANE
        x2d = x1d.reshape(rows, LANE)            # bitcast, no data movement
        tile_r = _tile_rows(rows, itemsize)
        n = rows * LANE
        out2d = pl.pallas_call(
            _make_kernel(a, b, o),
            out_shape=jax.ShapeDtypeStruct((rows, LANE), dtype),
            grid=(pl.cdiv(rows, tile_r),),
            in_specs=[pl.BlockSpec((tile_r, LANE), lambda i: (i, 0))],
            out_specs=pl.BlockSpec((tile_r, LANE), lambda i: (i, 0)),
            compiler_params=pltpu.CompilerParams(
                dimension_semantics=("parallel",),
                vmem_limit_bytes=VMEM_LIMIT_BYTES,
            ),
            cost_estimate=pl.CostEstimate(
                flops=4 * n,
                transcendentals=n,
                bytes_accessed=2 * n * itemsize,
            ),
        )(x2d)
        return out2d.reshape(-1)

    if tail == 0:
        # Common case (total size a multiple of 128): zero extra copies.
        return run_bulk(x_flat).reshape(orig_shape)

    # Odd total size: bulk through the kernel, <128-element tail in plain JAX
    # (avoids a full-tensor pad + unpad round-trip through HBM).
    parts = []
    if main:
        parts.append(run_bulk(x_flat[:main]))
    tail_x = x_flat[main:].astype(jnp.float32)
    parts.append((o * jax.nn.sigmoid(a * tail_x - a * b)).astype(dtype))
    out_flat = jnp.concatenate(parts) if len(parts) > 1 else parts[0]
    return out_flat.reshape(orig_shape)


if __name__ == "__main__":
    # Module scalars (alpha, beta, omega) from __init__.
    alpha, beta, omega = 2.0, 0.5, 3.0

    key = jax.random.PRNGKey(0)
    x = jax.random.normal(key, (2, 4, 16, 16), dtype=jnp.float32)  # NCHW

    out = jax.block_until_ready(generalized_logistic(x, alpha, beta, omega))
    ref = omega * jax.nn.sigmoid(alpha * (x - beta))
    assert out.shape == x.shape and out.dtype == x.dtype
    assert jnp.allclose(out, ref, atol=1e-5, rtol=1e-5)

    # Odd-sized tensor exercises the tail path (no pad round-trip through the kernel).
    x2 = jax.random.normal(jax.random.PRNGKey(0), (3, 5, 7, 11), dtype=jnp.float32)
    out2 = jax.block_until_ready(generalized_logistic(x2, alpha, beta, omega))
    ref2 = omega * jax.nn.sigmoid(alpha * (x2 - beta))
    assert out2.shape == x2.shape and out2.dtype == x2.dtype
    assert jnp.allclose(out2, ref2, atol=1e-5, rtol=1e-5)

    print("KERNEL_OK")
</pallas_src>

<mosaic_0001>
module attributes {stable_mosaic.version = 11 : i64} {
  func.func @kernel(%arg0: i32, %arg1: memref<16x128xf32, #tpu.memory_space<vmem>>, %arg2: memref<16x128xf32, #tpu.memory_space<vmem>>) attributes {dimension_semantics = [#tpu.dimension_semantics<parallel>], iteration_bounds = array<i64: 1>, scalar_prefetch = 0 : i64, scratch_operands = 0 : i64, tpu.core_type = #tpu.core_type<tc>, window_params = [{transform_indices = @transform_0, window_bounds = array<i64: 16, 128>}, {transform_indices = @transform_1, window_bounds = array<i64: 16, 128>}]} {
    %c0 = arith.constant 0 : index
    %c0_0 = arith.constant 0 : index
    %0 = vector.load %arg1[%c0, %c0_0] : memref<16x128xf32, #tpu.memory_space<vmem>>, vector<16x128xf32>
    %cst = arith.constant 2.000000e+00 : f32
    %1 = vector.broadcast %cst : f32 to vector<16x128xf32>
    %2 = arith.mulf %1, %0 : vector<16x128xf32>
    %cst_1 = arith.constant 1.000000e+00 : f32
    %3 = vector.broadcast %cst_1 : f32 to vector<16x128xf32>
    %4 = arith.subf %2, %3 : vector<16x128xf32>
    %5 = arith.negf %4 : vector<16x128xf32>
    %6 = math.exp %5 : vector<16x128xf32>
    %cst_2 = arith.constant 1.000000e+00 : f32
    %7 = vector.broadcast %cst_2 : f32 to vector<16x128xf32>
    %8 = arith.addf %7, %6 : vector<16x128xf32>
    %9 = arith.divf %7, %8 : vector<16x128xf32>
    %cst_3 = arith.constant 3.000000e+00 : f32
    %10 = vector.broadcast %cst_3 : f32 to vector<16x128xf32>
    %11 = arith.mulf %10, %9 : vector<16x128xf32>
    %c0_4 = arith.constant 0 : index
    %c0_5 = arith.constant 0 : index
    %12 = vector.load %arg2[%c0_4, %c0_5] : memref<16x128xf32, #tpu.memory_space<vmem>>, vector<16x128xf32>
    tpu.vector_store %arg2[%c0_4, %c0_5], %11 {strides = array<i32>} : memref<16x128xf32, #tpu.memory_space<vmem>>, vector<16x128xf32>,
    return
  }
  func.func @transform_0(%arg0: i32) -> (i32, i32) {
    %c0_i32 = arith.constant 0 : i32
    %c0_i32_0 = arith.constant 0 : i32
    return %arg0, %c0_i32 : i32, i32
  }
  func.func @transform_1(%arg0: i32) -> (i32, i32) {
    %c0_i32 = arith.constant 0 : i32
    %c0_i32_0 = arith.constant 0 : i32
    return %arg0, %c0_i32 : i32, i32
  }
}

</mosaic_0001>

<llo_original>
// kernel: tpu_custom_call.1
$region0: #{tpu_custom_call.1}
  #allocation0 [shape = 'u32[]', space=smem, size = 0x4, offset = 0x4, fixed_abs, tag = 'smem constant byte address 0x4 - core index']
  #allocation1 [shape = 'u32[144,128]{1,0:T(1,128)}', space=vmem, size = 0x12000, scoped, tag = 'internal scratch']
  %s0 = inlined_call_operand.hbm [shape: f32[16,128], index: 0, kind: input, shape index: {}]
  %s1 = inlined_call_operand.hbm [shape: f32[16,128], index: 1, kind: output, shape index: {}]
  %s2 = sld [smem:[#allocation0]]
  $region18: #{tpu_custom_call.1} parent=0
    _
  %s4 = ssub.s32 1, %s2
  %s5 = scalar_select 0, %s4, %s2
  $region1: #{tpu_custom_call.1} parent=0
    #allocation2 [shape = 'u8[8192]{0}', space=vmem, size = 0x2000, scoped, tag = 'input window, operand 0, single buffered']
    #allocation3 [shape = 's32[1]{0}', space=sflag, size = 0x4, scoped, tag = 'scoped memory for tpu_custom_call.1']
    #allocation4 [shape = 's32[1]{0}', space=sflag, size = 0x4, scoped, tag = 'scoped memory for tpu_custom_call.1']
    #allocation5 [shape = 'u8[8192]{0}', space=vmem, size = 0x2000, scoped, tag = 'output window, operand 0, single buffered']
    %6 = vsyncpa [#allocation3], 0
    %7 = vsyncpa [#allocation4], 0
    // Predicated region
    $region2: #{tpu_custom_call.1} parent=1 // pred_check
      _
    $region3: #{tpu_custom_call.1} parent=1 // pred_check_branch
      %9 = sbr.rel (0) target = $region5
    $region4: #{tpu_custom_call.1} parent=1 // pred_region
      %s11 = ssub.s32 256, 256
      %12 = vsyncadd [#allocation3], %s11
      %s13 = sshll.u32 [#allocation2], 4
      %s14 = int_to_ptr.vmem [resolvable:$true] %s13
      %19 = dma.hbm_to_vmem [thread:$0]  %s0, 256, %s14, [#allocation3], 128, 128, 8
    $region5: #{tpu_custom_call.1} parent=1 // pred_fallthru
      _
    // Predicated region
    $region6: #{tpu_custom_call.1} parent=1 // pred_check
      _
    $region7: #{tpu_custom_call.1} parent=1 // pred_check_branch
      %21 = sbr.rel (0) target = $region9
    $region8: #{tpu_custom_call.1} parent=1 // pred_region
      %22 = dma.done [#allocation3], 256
    $region9: #{tpu_custom_call.1} parent=1 // pred_fallthru
      _
    %v23 = vld [vmem:[#allocation2] sm:$0xff]
    %v24 = vld [vmem:[#allocation2 + $0x8] sm:$0xff]
    %v25 = vmul.f32 %v23, 2.0
    %v26 = vmul.f32 %v24, 2.0
    %v27 = vsub.f32 %v25, 1.0
    %v28 = vsub.f32 %v26, 1.0
    %v29 = vxor.u32 %v27, 2147483648
    %v30 = vxor.u32 %v28, 2147483648
    %v31 = vmul.f32 %v29, 1.442695
    %v32 = vpow.pop %v31
    %v33 = vmul.f32 %v30, 1.442695
    %v34 = vpow.pop %v33
    %v35 = vadd.f32 %v32, 1.0
    %v36 = vadd.f32 %v34, 1.0
    %v37 = vrcp.pop %v35
    %v38 = vmul.f32 1.0, %v37
    %v39 = vrcp.pop %v36
    %v40 = vmul.f32 1.0, %v39
    %v41 = vmul.f32 %v38, 3.0
    %v42 = vmul.f32 %v40, 3.0
    %43 = vst [vmem:[#allocation5] sm:$0xff] %v41
    %44 = vst [vmem:[#allocation5 + $0x8] sm:$0xff] %v42
    // Predicated region
    $region10: #{tpu_custom_call.1} parent=1 // pred_check
      _
    $region11: #{tpu_custom_call.1} parent=1 // pred_check_branch
      %46 = sbr.rel (0) target = $region13
    $region12: #{tpu_custom_call.1} parent=1 // pred_region
      %s48 = ssub.s32 256, 256
      %49 = vsyncadd [#allocation4], %s48
      %s50 = sshll.u32 [#allocation5], 4
      %s51 = int_to_ptr.vmem [resolvable:$true] %s50
      %56 = dma.vmem_to_hbm [thread:$0]  %s51, 256, %s1, [#allocation4], 128, 128, 8
    $region13: #{tpu_custom_call.1} parent=1 // pred_fallthru
      _
    // Predicated region
    $region14: #{tpu_custom_call.1} parent=1 // pred_check
      _
    $region15: #{tpu_custom_call.1} parent=1 // pred_check_branch
      %58 = sbr.rel (0) target = $region17
    $region16: #{tpu_custom_call.1} parent=1 // pred_region
      %59 = dma.done [#allocation4], 256
    $region17: #{tpu_custom_call.1} parent=1 // pred_fallthru
      _
    %60 = vsyncpa [#allocation3], 1
    %61 = vsyncpa [#allocation4], 1

</llo_original>
